<compile_context>
chip_gen: v7x
topology: tpu7x:2x2x1
jax: 0.10.0
libtpu: 0.0.40
codegen_flags: <defaults>
</compile_context>

<pallas_src>
import numpy as np

import jax
import jax.numpy as jnp
from jax.experimental import pallas as pl
from jax.experimental.pallas import tpu as pltpu

SEQ_LEN = 32      # hardcoded by the reshape in the PyTorch forward
PRED_LEN = 16
CHANNELS = 8      # enc_in
BATCH = 128       # hardcoded by the reshape in the PyTorch forward
KSIZE = 25        # series_decomp kernel_size
PAD = (KSIZE - 1) // 2


# ---------------------------------------------------------------------------
# Kernel: one MXU matvec + bias, everything VMEM-resident (~129 KiB), no grid.
# ---------------------------------------------------------------------------
def dlinear_kernel(x_ref, w_ref, const_ref, y_ref):
    """x_ref: (B, L*C) VMEM; w_ref: (L*C, 1) VMEM; const_ref: (1,) SMEM;
    y_ref: (B, 1) VMEM (512 B masked store — negligible)."""
    y_ref[...] = (
        jnp.dot(x_ref[...], w_ref[...], preferred_element_type=jnp.float32)
        + const_ref[0]
    )


def dlinear_forward(x, w_flat, const):
    """x: (B, seq_len, channels) f32 -> (B, 1, 1) f32 (matches PyTorch output)."""
    B, L, C = x.shape
    x_flat = x.reshape(B, L * C)   # zero-copy: native (l, c) row-major flattening
    y = pl.pallas_call(
        dlinear_kernel,
        out_shape=jax.ShapeDtypeStruct((B, 1), jnp.float32),
        in_specs=[
            pl.BlockSpec(memory_space=pltpu.MemorySpace.VMEM),   # x_flat (128 KiB)
            pl.BlockSpec(memory_space=pltpu.MemorySpace.VMEM),   # folded weights (1 KiB)
            pl.BlockSpec(memory_space=pltpu.MemorySpace.SMEM),   # folded bias scalar
        ],
        out_specs=pl.BlockSpec(memory_space=pltpu.MemorySpace.VMEM),
    )(x_flat, w_flat, const)
    # PyTorch: (y1 + y2).transpose(1, 2) -> (B, 1, 1)
    return y.reshape(B, 1, 1)


# ---------------------------------------------------------------------------
# One-time (model-load) parameter folding — NOT on the per-call path.
# ---------------------------------------------------------------------------
def moving_avg_matrix(channels, kernel_size):
    """Channel-mixing matrix M with trend[b, :, l] = M @ x_t[b, :, l].

    Built by the exact edge-replicated clamping rule of moving_avg, so it is
    valid for any (channels, kernel_size) — no PAD >= channels-1 assumption.
    """
    pad = (kernel_size - 1) // 2
    m = np.zeros((channels, channels), dtype=np.float32)
    for c in range(channels):
        for k in range(kernel_size):
            j = min(max(c + k - pad, 0), channels - 1)
            m[c, j] += 1.0 / kernel_size
    return jnp.asarray(m)


def fold_params(params):
    """Fold the whole affine chain into (w_flat: (L*C, 1), const: (1,)).

    For each channel c and each branch the chain collapses to
        contribution_c(b) = <component[b, c, :], w_c> + const_c
    with w_c = att_c * Wenc[c]^T @ (Wdec[c]^T @ wpoint_c).  Since
    seasonal = (I - M) x_t and trend = M x_t, the two branches further fold to
        y(b) = <x_t[b], w_s + M^T (w_t - w_s)> + const.
    """
    C, L = CHANNELS, SEQ_LEN
    hp = jax.lax.Precision.HIGHEST

    att = jax.nn.softmax(params['fs_attention'], axis=0)[:, 0]            # (C,)
    wps = params['Wps'].reshape(C, L)                                     # (C, L)
    wpt = params['Wpt'].reshape(C, L)
    u_s = jnp.einsum('clp,cl->cp', params['Wdse'], wps, precision=hp)     # (C, P)
    u_t = jnp.einsum('clp,cl->cp', params['Wdtr'], wpt, precision=hp)
    w_s = att[:, None] * jnp.einsum('cpl,cp->cl', params['Wse'], u_s, precision=hp)
    w_t = att[:, None] * jnp.einsum('cpl,cp->cl', params['Wtr'], u_t, precision=hp)
    c_s = att * jnp.sum(params['bse'] * u_s, axis=1) + jnp.sum(params['bdse'] * wps, axis=1)
    c_t = att * jnp.sum(params['btr'] * u_t, axis=1) + jnp.sum(params['bdtr'] * wpt, axis=1)
    const = (jnp.sum(c_s) + jnp.sum(c_t)
             + params['bps'][0] + params['bpt'][0]).reshape(1)            # (1,)

    # Fold the (linear) moving-average decomposition into the weights.
    m = moving_avg_matrix(C, KSIZE)                                       # (C, C)
    w_eff = w_s + jnp.einsum('cj,cl->jl', m, w_t - w_s, precision=hp)     # (C, L)

    # Reorder to x's native (B, L, C) flattening (flat index l*C + c).
    w_flat = w_eff.T.reshape(L * C, 1)                                    # (L*C, 1)
    return w_flat, const


# ---------------------------------------------------------------------------
# Synthetic parameters + pure-JAX reference (mirrors the PyTorch forward).
# ---------------------------------------------------------------------------
def init_params(key):
    """Deterministic synthetic parameters with the shapes defined by __init__."""
    C, L, P = CHANNELS, SEQ_LEN, PRED_LEN
    ks = jax.random.split(key, 12)
    s = 0.1
    return dict(
        Wse=jax.random.normal(ks[0], (C, P, L), jnp.float32) * s,
        bse=jax.random.normal(ks[1], (C, P), jnp.float32) * s,
        Wtr=jax.random.normal(ks[2], (C, P, L), jnp.float32) * s,
        btr=jax.random.normal(ks[3], (C, P), jnp.float32) * s,
        Wdse=jax.random.normal(ks[4], (C, L, P), jnp.float32) * s,
        bdse=jax.random.normal(ks[5], (C, L), jnp.float32) * s,
        Wdtr=jax.random.normal(ks[6], (C, L, P), jnp.float32) * s,
        bdtr=jax.random.normal(ks[7], (C, L), jnp.float32) * s,
        Wps=jax.random.normal(ks[8], (1, C * L), jnp.float32) * s,
        bps=jax.random.normal(ks[9], (1,), jnp.float32) * s,
        Wpt=jax.random.normal(ks[10], (1, C * L), jnp.float32) * s,
        bpt=jax.random.normal(ks[11], (1,), jnp.float32) * s,
        fs_attention=jnp.ones((C, 1), jnp.float32),   # as initialized in __init__
    )


def dlinear_ref(x, params):
    """Pure-JAX reference reproducing the PyTorch forward (inference path)."""
    B, L, C = x.shape
    hp = jax.lax.Precision.HIGHEST
    xt = jnp.transpose(x, (0, 2, 1))                                      # (B, C, L)
    front = jnp.repeat(xt[:, 0:1, :], PAD, axis=1)
    end = jnp.repeat(xt[:, -1:, :], PAD, axis=1)
    xp = jnp.concatenate([front, xt, end], axis=1)                        # (B, C+24, L)
    windows = jnp.stack([xp[:, j:j + C, :] for j in range(KSIZE)], axis=0)
    trend = jnp.mean(windows, axis=0)                                     # (B, C, L)
    seasonal = xt - trend

    s_out = jnp.einsum('bcl,cpl->bcp', seasonal, params['Wse'], precision=hp) + params['bse'][None]
    t_out = jnp.einsum('bcl,cpl->bcp', trend, params['Wtr'], precision=hp) + params['btr'][None]
    att = jax.nn.softmax(params['fs_attention'], axis=0)                  # (C, 1)
    s_out = s_out * att[None]
    t_out = t_out * att[None]
    s1 = jnp.einsum('bcp,clp->bcl', s_out, params['Wdse'], precision=hp) + params['bdse'][None]
    t1 = jnp.einsum('bcp,clp->bcl', t_out, params['Wdtr'], precision=hp) + params['bdtr'][None]
    rs = s1.reshape(128, 1, SEQ_LEN * C)   # hardcoded 128 / 32 as in PyTorch forward
    rt = t1.reshape(128, 1, SEQ_LEN * C)
    y1 = jnp.einsum('bij,oj->bio', rs, params['Wps'], precision=hp) + params['bps']
    y2 = jnp.einsum('bij,oj->bio', rt, params['Wpt'], precision=hp) + params['bpt']
    return jnp.transpose(y1 + y2, (0, 2, 1))                              # (B, 1, 1)


# TODO(synk): pretrain / project / IsTest branches (Proj_* Linears + PReLU path)
# are not exercised by the default forward and are not implemented.

if __name__ == "__main__":
    key = jax.random.PRNGKey(0)
    kx, kp = jax.random.split(key)
    x = jax.random.normal(kx, (BATCH, SEQ_LEN, CHANNELS), jnp.float32)
    params = init_params(kp)

    # One-time parameter fold (model-load cost, off the per-call path).
    w_flat, const = jax.block_until_ready(fold_params(params))

    fwd = jax.jit(dlinear_forward)
    y = fwd(x, w_flat, const)
    y = jax.block_until_ready(y)

    y_ref = dlinear_ref(x, params)
    assert y.shape == (BATCH, 1, 1), y.shape
    max_err = float(jnp.max(jnp.abs(y - y_ref)))
    assert jnp.allclose(y, y_ref, rtol=1e-3, atol=1e-3), f"max abs err {max_err}"
    print("KERNEL_OK")
</pallas_src>

<mosaic_0001>
module attributes {stable_mosaic.version = 11 : i64} {
  func.func @dlinear_kernel(%arg0: memref<128x256xf32, #tpu.memory_space<vmem>>, %arg1: memref<256x1xf32, #tpu.memory_space<vmem>>, %arg2: memref<1xf32, #tpu.memory_space<smem>>, %arg3: memref<128x1xf32, #tpu.memory_space<vmem>>) attributes {dimension_semantics = [], scalar_prefetch = 0 : i64, scratch_operands = 0 : i64, tpu.core_type = #tpu.core_type<tc>} {
    %c0 = arith.constant 0 : index
    %c0_0 = arith.constant 0 : index
    %0 = vector.load %arg0[%c0, %c0_0] : memref<128x256xf32, #tpu.memory_space<vmem>>, vector<128x256xf32>
    %c0_1 = arith.constant 0 : index
    %c0_2 = arith.constant 0 : index
    %1 = vector.load %arg1[%c0_1, %c0_2] : memref<256x1xf32, #tpu.memory_space<vmem>>, vector<256x1xf32>
    %cst = arith.constant dense<0.000000e+00> : vector<128x1xf32>
    %2 = tpu.matmul %0, %1, %cst {dimension_numbers = #tpu.dot_dimension_numbers<[1], [0], [0], [1], [0, 0, 1, 1], [], []>} : vector<128x256xf32>, vector<256x1xf32>, vector<128x1xf32> -> vector<128x1xf32>
    %c0_3 = arith.constant 0 : index
    %3 = memref.load %arg2[%c0_3] : memref<1xf32, #tpu.memory_space<smem>>
    %4 = vector.broadcast %3 : f32 to vector<128x1xf32>
    %5 = arith.addf %2, %4 : vector<128x1xf32>
    %c0_4 = arith.constant 0 : index
    %c0_5 = arith.constant 0 : index
    %6 = vector.load %arg3[%c0_4, %c0_5] : memref<128x1xf32, #tpu.memory_space<vmem>>, vector<128x1xf32>
    tpu.vector_store %arg3[%c0_4, %c0_5], %5 {strides = array<i32>} : memref<128x1xf32, #tpu.memory_space<vmem>>, vector<128x1xf32>,
    return
  }
}

</mosaic_0001>

<llo_original>
// kernel: dlinear_forward.1
$region0: #{dlinear_forward.1}
  #allocation0 [shape = 'u32[]', space=smem, size = 0x4, offset = 0x4, fixed_abs, tag = 'smem constant byte address 0x4 - core index']
  #allocation1 [shape = 'u32[144,128]{1,0:T(1,128)}', space=vmem, size = 0x12000, scoped, tag = 'internal scratch']
  #allocation2 [shape = 'f32[1]{0:T(128)S(6)}', space=smem, size = 0x200, scoped, tag = 'scoped memory for dlinear_forward.1']
  %s0 = inlined_call_operand.vmem [shape: f32[128,256], index: 0, kind: input, shape index: {}]
  %s1 = inlined_call_operand.vmem [shape: f32[256,1], index: 1, kind: input, shape index: {}]
  %s2 = inlined_call_operand.<no memory space> [shape: f32[1], index: 2, kind: input, shape index: {}]
  %s3 = inlined_call_operand.vmem [shape: f32[128,1], index: 3, kind: output, shape index: {}]
  %s4 = sld [smem:[#allocation0]]
  $region22: #{dlinear_forward.1} parent=0
    _
  %s6 = ssub.s32 1, %s4
  %s7 = scalar_select 0, %s6, %s4
  %8 = sst [smem:[#allocation2]] %s2
  // Predicated region
  $region2: #{dlinear_forward.1} parent=0 // pred_check
    _
  $region3: #{dlinear_forward.1} parent=0 // pred_check_branch
    %10 = sbr.rel (0) target = $region5
  $region4: #{dlinear_forward.1} parent=0 // pred_region
    _
  $region5: #{dlinear_forward.1} parent=0 // pred_fallthru
    _
  // Predicated region
  $region6: #{dlinear_forward.1} parent=0 // pred_check
    _
  $region7: #{dlinear_forward.1} parent=0 // pred_check_branch
    %12 = sbr.rel (0) target = $region9
  $region8: #{dlinear_forward.1} parent=0 // pred_region
    _
  $region9: #{dlinear_forward.1} parent=0 // pred_fallthru
    _
  // Predicated region
  $region10: #{dlinear_forward.1} parent=0 // pred_check
    _
  $region11: #{dlinear_forward.1} parent=0 // pred_check_branch
    %14 = sbr.rel (0) target = $region13
  $region12: #{dlinear_forward.1} parent=0 // pred_region
    _
  $region13: #{dlinear_forward.1} parent=0 // pred_fallthru
    _
  %v15 = vld [vmem:[%s0] sm:$0xff]
  %v16 = vld [vmem:[%s0 + $0x8] sm:$0xff]
  %v17 = vld [vmem:[%s0 + $0x10] sm:$0xff]
  %v18 = vld [vmem:[%s0 + $0x18] sm:$0xff]
  %v19 = vld [vmem:[%s0 + $0x20] sm:$0xff]
  %v20 = vld [vmem:[%s0 + $0x28] sm:$0xff]
  %v21 = vld [vmem:[%s0 + $0x30] sm:$0xff]
  %v22 = vld [vmem:[%s0 + $0x38] sm:$0xff]
  %v23 = vld [vmem:[%s0 + $0x40] sm:$0xff]
  %v24 = vld [vmem:[%s0 + $0x48] sm:$0xff]
  %v25 = vld [vmem:[%s0 + $0x50] sm:$0xff]
  %v26 = vld [vmem:[%s0 + $0x58] sm:$0xff]
  %v27 = vld [vmem:[%s0 + $0x60] sm:$0xff]
  %v28 = vld [vmem:[%s0 + $0x68] sm:$0xff]
  %v29 = vld [vmem:[%s0 + $0x70] sm:$0xff]
  %v30 = vld [vmem:[%s0 + $0x78] sm:$0xff]
  %v31 = vld [vmem:[%s0 + $0x80] sm:$0xff]
  %v32 = vld [vmem:[%s0 + $0x88] sm:$0xff]
  %v33 = vld [vmem:[%s0 + $0x90] sm:$0xff]
  %v34 = vld [vmem:[%s0 + $0x98] sm:$0xff]
  %v35 = vld [vmem:[%s0 + $0xa0] sm:$0xff]
  %v36 = vld [vmem:[%s0 + $0xa8] sm:$0xff]
  %v37 = vld [vmem:[%s0 + $0xb0] sm:$0xff]
  %v38 = vld [vmem:[%s0 + $0xb8] sm:$0xff]
  %v39 = vld [vmem:[%s0 + $0xc0] sm:$0xff]
  %v40 = vld [vmem:[%s0 + $0xc8] sm:$0xff]
  %v41 = vld [vmem:[%s0 + $0xd0] sm:$0xff]
  %v42 = vld [vmem:[%s0 + $0xd8] sm:$0xff]
  %v43 = vld [vmem:[%s0 + $0xe0] sm:$0xff]
  %v44 = vld [vmem:[%s0 + $0xe8] sm:$0xff]
  %v45 = vld [vmem:[%s0 + $0xf0] sm:$0xff]
  %v46 = vld [vmem:[%s0 + $0xf8] sm:$0xff]
  %v47 = vld [vmem:[%s1] sm:$0xff]
  %v48 = vld [vmem:[%s1 + $0x8] sm:$0xff]
  %v49 = vld [vmem:[%s1 + $0x10] sm:$0xff]
  %v50 = vld [vmem:[%s1 + $0x18] sm:$0xff]
  %v51 = vld [vmem:[%s1 + $0x20] sm:$0xff]
  %v52 = vld [vmem:[%s1 + $0x28] sm:$0xff]
  %v53 = vld [vmem:[%s1 + $0x30] sm:$0xff]
  %v54 = vld [vmem:[%s1 + $0x38] sm:$0xff]
  %v55 = vld [vmem:[%s1 + $0x40] sm:$0xff]
  %v56 = vld [vmem:[%s1 + $0x48] sm:$0xff]
  %v57 = vld [vmem:[%s1 + $0x50] sm:$0xff]
  %v58 = vld [vmem:[%s1 + $0x58] sm:$0xff]
  %v59 = vld [vmem:[%s1 + $0x60] sm:$0xff]
  %v60 = vld [vmem:[%s1 + $0x68] sm:$0xff]
  %v61 = vld [vmem:[%s1 + $0x70] sm:$0xff]
  %v62 = vld [vmem:[%s1 + $0x78] sm:$0xff]
  %v63 = vld [vmem:[%s1 + $0x80] sm:$0xff]
  %v64 = vld [vmem:[%s1 + $0x88] sm:$0xff]
  %v65 = vld [vmem:[%s1 + $0x90] sm:$0xff]
  %v66 = vld [vmem:[%s1 + $0x98] sm:$0xff]
  %v67 = vld [vmem:[%s1 + $0xa0] sm:$0xff]
  %v68 = vld [vmem:[%s1 + $0xa8] sm:$0xff]
  %v69 = vld [vmem:[%s1 + $0xb0] sm:$0xff]
  %v70 = vld [vmem:[%s1 + $0xb8] sm:$0xff]
  %v71 = vld [vmem:[%s1 + $0xc0] sm:$0xff]
  %v72 = vld [vmem:[%s1 + $0xc8] sm:$0xff]
  %v73 = vld [vmem:[%s1 + $0xd0] sm:$0xff]
  %v74 = vld [vmem:[%s1 + $0xd8] sm:$0xff]
  %v75 = vld [vmem:[%s1 + $0xe0] sm:$0xff]
  %v76 = vld [vmem:[%s1 + $0xe8] sm:$0xff]
  %v77 = vld [vmem:[%s1 + $0xf0] sm:$0xff]
  %v78 = vld [vmem:[%s1 + $0xf8] sm:$0xff]
  %s79 = sld [smem:[#allocation2]]
  %v80 = vstv %s79
  %81 = vmatprep.subr.mxu0 0.0
  %82 = vmatpush1.msra.mxu0 %v47
  %83 = vmatprep.subr.mxu0 0.0
  %84 = vmatpush1.msra.mxu0 %v48
  %85 = vmatprep.subr.mxu0 0.0
  %86 = vmatpush1.msra.mxu0 %v49
  %87 = vmatprep.subr.mxu0 0.0
  %88 = vmatpush1.msra.mxu0 %v50
  %89 = vmatprep.subr.mxu0 0.0
  %90 = vmatpush1.msra.mxu0 %v51
  %91 = vmatprep.subr.mxu0 0.0
  %92 = vmatpush1.msra.mxu0 %v52
  %93 = vmatprep.subr.mxu0 0.0
  %94 = vmatpush1.msra.mxu0 %v53
  %95 = vmatprep.subr.mxu0 0.0
  %96 = vmatpush1.msra.mxu0 %v54
  %97 = vmatprep.subr.mxu0 0.0
  %98 = vmatpush1.msra.mxu0 %v55
  %99 = vmatprep.subr.mxu0 0.0
  %100 = vmatpush1.msra.mxu0 %v56
  %101 = vmatprep.subr.mxu0 0.0
  %102 = vmatpush1.msra.mxu0 %v57
  %103 = vmatprep.subr.mxu0 0.0
  %104 = vmatpush1.msra.mxu0 %v58
  %105 = vmatprep.subr.mxu0 0.0
  %106 = vmatpush1.msra.mxu0 %v59
  %107 = vmatprep.subr.mxu0 0.0
  %108 = vmatpush1.msra.mxu0 %v60
  %109 = vmatprep.subr.mxu0 0.0
  %110 = vmatpush1.msra.mxu0 %v61
  %111 = vmatprep.subr.mxu0 0.0
  %112 = vmatpush1.msra.mxu0 %v62
  %113 = vmatprep.subr.mxu0 0.0
  %114 = vmatpush1.msra.mxu0 %v63
  %115 = vmatprep.subr.mxu0 0.0
  %116 = vmatpush1.msra.mxu0 %v64
  %117 = vmatprep.subr.mxu0 0.0
  %118 = vmatpush1.msra.mxu0 %v65
  %119 = vmatprep.subr.mxu0 0.0
  %120 = vmatpush1.msra.mxu0 %v66
  %121 = vmatprep.subr.mxu0 0.0
  %122 = vmatpush1.msra.mxu0 %v67
  %123 = vmatprep.subr.mxu0 0.0
  %124 = vmatpush1.msra.mxu0 %v68
  %125 = vmatprep.subr.mxu0 0.0
  %126 = vmatpush1.msra.mxu0 %v69
  %127 = vmatprep.subr.mxu0 0.0
  %128 = vmatpush1.msra.mxu0 %v70
  %129 = vmatprep.subr.mxu0 0.0
  %130 = vmatpush1.msra.mxu0 %v71
  %131 = vmatprep.subr.mxu0 0.0
  %132 = vmatpush1.msra.mxu0 %v72
  %133 = vmatprep.subr.mxu0 0.0
  %134 = vmatpush1.msra.mxu0 %v73
  %135 = vmatprep.subr.mxu0 0.0
  %136 = vmatpush1.msra.mxu0 %v74
  %137 = vmatprep.subr.mxu0 0.0
  %138 = vmatpush1.msra.mxu0 %v75
  %139 = vmatprep.subr.mxu0 0.0
  %140 = vmatpush1.msra.mxu0 %v76
  %141 = vmatprep.subr.mxu0 0.0
  %142 = vmatpush1.msra.mxu0 %v77
  %143 = vmatprep.subr.mxu0 0.0
  %144 = vmatpush1.msra.mxu0 %v78
  %145 = vmatprep.mubr.f32.mxu0 %v16
  %146 = vmatmul.mubr.f32.gmra.mrb[0].mxu0 %v15
  %v147 = vpop.f32.mrb[0].mxu0
  %v148 = vadd.f32 %v80, %v147
  %v149 = vpop.f32.mrb[0].mxu0
  %150 = vmatprep.mubr.f32.mxu0 %v18
  %151 = vmatmul.mubr.f32.gmra.mrb[0].mxu0 %v17
  %v152 = vpop.f32.mrb[0].mxu0
  %v153 = vadd.f32 %v80, %v152
  %v154 = vpop.f32.mrb[0].mxu0
  %155 = vmatprep.mubr.f32.mxu0 %v20
  %156 = vmatmul.mubr.f32.gmra.mrb[0].mxu0 %v19
  %v157 = vpop.f32.mrb[0].mxu0
  %v158 = vadd.f32 %v80, %v157
  %v159 = vpop.f32.mrb[0].mxu0
  %160 = vmatprep.mubr.f32.mxu0 %v22
  %161 = vmatmul.mubr.f32.gmra.mrb[0].mxu0 %v21
  %v162 = vpop.f32.mrb[0].mxu0
  %v163 = vadd.f32 %v80, %v162
  %v164 = vpop.f32.mrb[0].mxu0
  %165 = vmatprep.mubr.f32.mxu0 %v24
  %166 = vmatmul.mubr.f32.gmra.mrb[0].mxu0 %v23
  %v167 = vpop.f32.mrb[0].mxu0
  %v168 = vadd.f32 %v80, %v167
  %v169 = vpop.f32.mrb[0].mxu0
  %170 = vmatprep.mubr.f32.mxu0 %v26
  %171 = vmatmul.mubr.f32.gmra.mrb[0].mxu0 %v25
  %v172 = vpop.f32.mrb[0].mxu0
  %v173 = vadd.f32 %v80, %v172
  %v174 = vpop.f32.mrb[0].mxu0
  %175 = vmatprep.mubr.f32.mxu0 %v28
  %176 = vmatmul.mubr.f32.gmra.mrb[0].mxu0 %v27
  %v177 = vpop.f32.mrb[0].mxu0
  %v178 = vadd.f32 %v80, %v177
  %v179 = vpop.f32.mrb[0].mxu0
  %180 = vmatprep.mubr.f32.mxu0 %v30
  %181 = vmatmul.mubr.f32.gmra.mrb[0].mxu0 %v29
  %v182 = vpop.f32.mrb[0].mxu0
  %v183 = vadd.f32 %v80, %v182
  %v184 = vpop.f32.mrb[0].mxu0
  %185 = vmatprep.mubr.f32.mxu0 %v32
  %186 = vmatmul.mubr.f32.gmra.mrb[0].mxu0 %v31
  %v187 = vpop.f32.mrb[0].mxu0
  %v188 = vadd.f32 %v80, %v187
  %v189 = vpop.f32.mrb[0].mxu0
  %190 = vmatprep.mubr.f32.mxu0 %v34
  %191 = vmatmul.mubr.f32.gmra.mrb[0].mxu0 %v33
  %v192 = vpop.f32.mrb[0].mxu0
  %v193 = vadd.f32 %v80, %v192
  %v194 = vpop.f32.mrb[0].mxu0
  %195 = vmatprep.mubr.f32.mxu0 %v36
  %196 = vmatmul.mubr.f32.gmra.mrb[0].mxu0 %v35
  %v197 = vpop.f32.mrb[0].mxu0
  %v198 = vadd.f32 %v80, %v197
  %v199 = vpop.f32.mrb[0].mxu0
  %200 = vmatprep.mubr.f32.mxu0 %v38
  %201 = vmatmul.mubr.f32.gmra.mrb[0].mxu0 %v37
  %v202 = vpop.f32.mrb[0].mxu0
  %v203 = vadd.f32 %v80, %v202
  %v204 = vpop.f32.mrb[0].mxu0
  %205 = vmatprep.mubr.f32.mxu0 %v40
  %206 = vmatmul.mubr.f32.gmra.mrb[0].mxu0 %v39
  %v207 = vpop.f32.mrb[0].mxu0
  %v208 = vadd.f32 %v80, %v207
  %v209 = vpop.f32.mrb[0].mxu0
  %210 = vmatprep.mubr.f32.mxu0 %v42
  %211 = vmatmul.mubr.f32.gmra.mrb[0].mxu0 %v41
  %v212 = vpop.f32.mrb[0].mxu0
  %v213 = vadd.f32 %v80, %v212
  %v214 = vpop.f32.mrb[0].mxu0
  %215 = vmatprep.mubr.f32.mxu0 %v44
  %216 = vmatmul.mubr.f32.gmra.mrb[0].mxu0 %v43
  %v217 = vpop.f32.mrb[0].mxu0
  %v218 = vadd.f32 %v80, %v217
  %v219 = vpop.f32.mrb[0].mxu0
  %220 = vmatprep.mubr.f32.mxu0 %v46
  %221 = vmatmul.mubr.f32.gmra.mrb[0].mxu0 %v45
  %v222 = vpop.f32.mrb[0].mxu0
  %v223 = vadd.f32 %v80, %v222
  %v224 = vpop.f32.mrb[0].mxu0
  %225 = vdwg.mxu0
  %vm226 = vcmask 7168
  %227 = vst.msk [vmem:[%s3] sm:$0xff] %vm226, %v148
  %228 = vst.msk [vmem:[%s3 + $0x8] sm:$0xff] %vm226, %v153
  %229 = vst.msk [vmem:[%s3 + $0x10] sm:$0xff] %vm226, %v158
  %230 = vst.msk [vmem:[%s3 + $0x18] sm:$0xff] %vm226, %v163
  %231 = vst.msk [vmem:[%s3 + $0x20] sm:$0xff] %vm226, %v168
  %232 = vst.msk [vmem:[%s3 + $0x28] sm:$0xff] %vm226, %v173
  %233 = vst.msk [vmem:[%s3 + $0x30] sm:$0xff] %vm226, %v178
  %234 = vst.msk [vmem:[%s3 + $0x38] sm:$0xff] %vm226, %v183
  %235 = vst.msk [vmem:[%s3 + $0x40] sm:$0xff] %vm226, %v188
  %236 = vst.msk [vmem:[%s3 + $0x48] sm:$0xff] %vm226, %v193
  %237 = vst.msk [vmem:[%s3 + $0x50] sm:$0xff] %vm226, %v198
  %238 = vst.msk [vmem:[%s3 + $0x58] sm:$0xff] %vm226, %v203
  %239 = vst.msk [vmem:[%s3 + $0x60] sm:$0xff] %vm226, %v208
  %240 = vst.msk [vmem:[%s3 + $0x68] sm:$0xff] %vm226, %v213
  %241 = vst.msk [vmem:[%s3 + $0x70] sm:$0xff] %vm226, %v218
  %242 = vst.msk [vmem:[%s3 + $0x78] sm:$0xff] %vm226, %v223
  // Predicated region
  $region14: #{dlinear_forward.1} parent=0 // pred_check
    _
  $region15: #{dlinear_forward.1} parent=0 // pred_check_branch
    %244 = sbr.rel (0) target = $region17
  $region16: #{dlinear_forward.1} parent=0 // pred_region
    _
  $region17: #{dlinear_forward.1} parent=0 // pred_fallthru
    _
  // Predicated region
  $region18: #{dlinear_forward.1} parent=0 // pred_check
    _
  $region19: #{dlinear_forward.1} parent=0 // pred_check_branch
    %246 = sbr.rel (0) target = $region21
  $region20: #{dlinear_forward.1} parent=0 // pred_region
    _
  $region21: #{dlinear_forward.1} parent=0 // pred_fallthru
    _

</llo_original>
